<compile_context>
chip_gen: v7x
topology: tpu7x:2x2x1
jax: 0.10.0
libtpu: 0.0.40
codegen_flags: <defaults>
</compile_context>

<pallas_src>
import jax
import jax.numpy as jnp
from jax.experimental import pallas as pl
from jax.experimental.pallas import tpu as pltpu


def _conv1x1_kernel(w_ref, x_ref, o_ref):
    """Per-pixel channel mix on dense (S, 128) slabs.

    w_ref: (Cout, Cin) float32 weights in SMEM (cheap scalar-broadcast reads).
    x_ref: (1, Cin,  S_tile, 128) input tile in VMEM.
    o_ref: (1, Cout, S_tile, 128) output tile in VMEM (unmasked lane-dense stores).
    """
    cout, cin = w_ref.shape
    for o in range(cout):
        # f32 accumulation regardless of input dtype (bf16-safe); full-vreg FMAs.
        acc = w_ref[o, 0] * x_ref[0, 0].astype(jnp.float32)          # (S_tile, 128)
        for c in range(1, cin):
            acc = acc + w_ref[o, c] * x_ref[0, c].astype(jnp.float32)
        o_ref[0, o] = acc.astype(o_ref.dtype)
    # NOTE: sigmoid from the PyTorch module is intentionally omitted — the module
    # returns the pre-sigmoid conv output (sigmoid result is unused).


def _round_down_mult(x, m):
    return (x // m) * m


def _round_up_mult(x, m):
    return ((x + m - 1) // m) * m


@jax.jit
def output_conv(x_nchw, weight):
    """OutputConv forward: 1x1 conv (no bias); returns pre-sigmoid conv output.

    x_nchw: [N, Cin, H, W]  (PyTorch NCHW convention)
    weight: [Cout, Cin]     (squeezed from PyTorch [Cout, Cin, 1, 1])
    returns: [N, Cout, H, W]  (same dtype as x)
    """
    N, Cin, H, W = x_nchw.shape
    Cout = weight.shape[0]
    HW = H * W
    itemsize = jnp.dtype(x_nchw.dtype).itemsize
    SUBLANE = 8

    # ---- Present the pixel axis as dense (S, 128) blocks -----------------------------
    # Pad HW up to a multiple of 128 once (no-op when already aligned, e.g. 16x16=256),
    # then reshape to [N, Cin, S, 128] so every tile row is a full 128-lane vector.
    HW_pad = pl.cdiv(HW, 128) * 128
    x3 = x_nchw.reshape(N, Cin, HW)
    if HW_pad != HW:
        x3 = jnp.pad(x3, ((0, 0), (0, 0), (0, HW_pad - HW)))
    S = HW_pad // 128
    x4 = x3.reshape(N, Cin, S, 128)

    # ---- Padding-aware tile sizing (exact with the (S,128) layout) -------------------
    # ~2 MiB per input tile buffer; BlockSpec double-buffers, and the output tile adds
    # Cout/Cin of that again -> ~7 MiB total at Cin=4/Cout=3 f32, well under v5e's
    # 16 MiB default scoped VMEM and v7x's 32 MiB default / 64 MiB physical.
    row_bytes = Cin * 128 * itemsize                       # input bytes per S-row
    cap_rows = max(SUBLANE, _round_down_mult((2 * 1024 * 1024) // row_bytes, SUBLANE))
    s_tile = min(S, cap_rows)
    # Keep the stream pipelined: aim for >=4 pixel-tiles per image when it is big enough
    # to split (>=2 when only halving is possible).  Also guarantees num_t >= 2 for the
    # N == 1 case so both v7x TensorCores get parallel work.
    if S >= 4 * SUBLANE:
        s_tile = min(s_tile, max(SUBLANE, _round_up_mult(pl.cdiv(S, 4), SUBLANE)))
    elif S >= 2 * SUBLANE:
        s_tile = min(s_tile, max(SUBLANE, _round_up_mult(pl.cdiv(S, 2), SUBLANE)))
    # s_tile is now either a multiple of 8 or the full extent S  -> legal block shape.
    num_t = pl.cdiv(S, s_tile)                             # ragged final block is masked

    w32 = weight.astype(jnp.float32)                       # f32 accumulation weights

    out4 = pl.pallas_call(
        _conv1x1_kernel,
        out_shape=jax.ShapeDtypeStruct((N, Cout, S, 128), x_nchw.dtype),
        grid=(N, num_t),
        in_specs=[
            pl.BlockSpec(memory_space=pltpu.MemorySpace.SMEM),               # weights
            pl.BlockSpec((1, Cin, s_tile, 128), lambda n, t: (n, 0, t, 0)),  # x tile
        ],
        out_specs=pl.BlockSpec((1, Cout, s_tile, 128), lambda n, t: (n, 0, t, 0)),
        compiler_params=pltpu.CompilerParams(
            dimension_semantics=("parallel", "parallel"),   # v7x megacore sharding
        ),
    )(w32, x4)

    # Free reshape back; drop the pixel padding if any.
    out3 = out4.reshape(N, Cout, HW_pad)
    if HW_pad != HW:
        out3 = out3[:, :, :HW]
    return out3.reshape(N, Cout, H, W)


if __name__ == "__main__":
    key = jax.random.PRNGKey(0)
    kx, kw = jax.random.split(key)

    N, Cin, H, W = 2, 4, 16, 16
    Cout = 3

    x = jax.random.normal(kx, (N, Cin, H, W), dtype=jnp.float32)
    # Deterministic synthetic weight (PyTorch kaiming-uniform bound; only the shape
    # [Cout, Cin, 1, 1] -> [Cout, Cin] matters for semantics).
    bound = 1.0 / (Cin ** 0.5)
    weight = jax.random.uniform(
        kw, (Cout, Cin), minval=-bound, maxval=bound, dtype=jnp.float32
    )

    out = output_conv(x, weight)
    out = jax.block_until_ready(out)

    # Reference check against plain-JAX 1x1 conv semantics (pre-sigmoid, like the module).
    ref = jnp.einsum("nchw,oc->nohw", x, weight)
    assert out.shape == (N, Cout, H, W)
    assert jnp.allclose(out, ref, atol=1e-5, rtol=1e-5)

    print("KERNEL_OK")
</pallas_src>

<mosaic_0001>
module attributes {stable_mosaic.version = 11 : i64} {
  func.func @_conv1x1_kernel(%arg0: i32, %arg1: i32, %arg2: memref<3x4xf32, #tpu.memory_space<smem>>, %arg3: memref<1x4x2x128xf32, #tpu.memory_space<vmem>>, %arg4: memref<1x3x2x128xf32, #tpu.memory_space<vmem>>) attributes {dimension_semantics = [#tpu.dimension_semantics<parallel>, #tpu.dimension_semantics<parallel>], iteration_bounds = array<i64: 2, 1>, scalar_prefetch = 0 : i64, scratch_operands = 0 : i64, tpu.core_type = #tpu.core_type<tc>, window_params = [{transform_indices = @transform_0, window_bounds = array<i64: 3, 4>}, {transform_indices = @transform_1, window_bounds = array<i64: 1, 4, 2, 128>}, {transform_indices = @transform_2, window_bounds = array<i64: 1, 3, 2, 128>}]} {
    %c0 = arith.constant 0 : index
    %c0_0 = arith.constant 0 : index
    %0 = memref.load %arg2[%c0, %c0_0] : memref<3x4xf32, #tpu.memory_space<smem>>
    %c0_1 = arith.constant 0 : index
    %c0_2 = arith.constant 0 : index
    %c0_3 = arith.constant 0 : index
    %c0_4 = arith.constant 0 : index
    %1 = vector.load %arg3[%c0_1, %c0_2, %c0_3, %c0_4] : memref<1x4x2x128xf32, #tpu.memory_space<vmem>>, vector<1x1x2x128xf32>
    %2 = vector.shape_cast %1 : vector<1x1x2x128xf32> to vector<2x128xf32>
    %3 = vector.broadcast %0 : f32 to vector<2x128xf32>
    %4 = arith.mulf %3, %2 : vector<2x128xf32>
    %c0_5 = arith.constant 0 : index
    %c1 = arith.constant 1 : index
    %5 = memref.load %arg2[%c0_5, %c1] : memref<3x4xf32, #tpu.memory_space<smem>>
    %c0_6 = arith.constant 0 : index
    %c1_7 = arith.constant 1 : index
    %c0_8 = arith.constant 0 : index
    %c0_9 = arith.constant 0 : index
    %6 = vector.load %arg3[%c0_6, %c1_7, %c0_8, %c0_9] : memref<1x4x2x128xf32, #tpu.memory_space<vmem>>, vector<1x1x2x128xf32>
    %7 = vector.shape_cast %6 : vector<1x1x2x128xf32> to vector<2x128xf32>
    %8 = vector.broadcast %5 : f32 to vector<2x128xf32>
    %9 = arith.mulf %8, %7 : vector<2x128xf32>
    %10 = arith.addf %4, %9 : vector<2x128xf32>
    %c0_10 = arith.constant 0 : index
    %c2 = arith.constant 2 : index
    %11 = memref.load %arg2[%c0_10, %c2] : memref<3x4xf32, #tpu.memory_space<smem>>
    %c0_11 = arith.constant 0 : index
    %c2_12 = arith.constant 2 : index
    %c0_13 = arith.constant 0 : index
    %c0_14 = arith.constant 0 : index
    %12 = vector.load %arg3[%c0_11, %c2_12, %c0_13, %c0_14] : memref<1x4x2x128xf32, #tpu.memory_space<vmem>>, vector<1x1x2x128xf32>
    %13 = vector.shape_cast %12 : vector<1x1x2x128xf32> to vector<2x128xf32>
    %14 = vector.broadcast %11 : f32 to vector<2x128xf32>
    %15 = arith.mulf %14, %13 : vector<2x128xf32>
    %16 = arith.addf %10, %15 : vector<2x128xf32>
    %c0_15 = arith.constant 0 : index
    %c3 = arith.constant 3 : index
    %17 = memref.load %arg2[%c0_15, %c3] : memref<3x4xf32, #tpu.memory_space<smem>>
    %c0_16 = arith.constant 0 : index
    %c3_17 = arith.constant 3 : index
    %c0_18 = arith.constant 0 : index
    %c0_19 = arith.constant 0 : index
    %18 = vector.load %arg3[%c0_16, %c3_17, %c0_18, %c0_19] : memref<1x4x2x128xf32, #tpu.memory_space<vmem>>, vector<1x1x2x128xf32>
    %19 = vector.shape_cast %18 : vector<1x1x2x128xf32> to vector<2x128xf32>
    %20 = vector.broadcast %17 : f32 to vector<2x128xf32>
    %21 = arith.mulf %20, %19 : vector<2x128xf32>
    %22 = arith.addf %16, %21 : vector<2x128xf32>
    %c0_20 = arith.constant 0 : index
    %c0_21 = arith.constant 0 : index
    %c0_22 = arith.constant 0 : index
    %c0_23 = arith.constant 0 : index
    %23 = vector.load %arg4[%c0_20, %c0_21, %c0_22, %c0_23] : memref<1x3x2x128xf32, #tpu.memory_space<vmem>>, vector<1x1x2x128xf32>
    %24 = vector.shape_cast %23 : vector<1x1x2x128xf32> to vector<2x128xf32>
    %25 = vector.shape_cast %22 : vector<2x128xf32> to vector<1x1x2x128xf32>
    tpu.vector_store %arg4[%c0_20, %c0_21, %c0_22, %c0_23], %25 {strides = array<i32>} : memref<1x3x2x128xf32, #tpu.memory_space<vmem>>, vector<1x1x2x128xf32>,
    %c1_24 = arith.constant 1 : index
    %c0_25 = arith.constant 0 : index
    %26 = memref.load %arg2[%c1_24, %c0_25] : memref<3x4xf32, #tpu.memory_space<smem>>
    %c0_26 = arith.constant 0 : index
    %c0_27 = arith.constant 0 : index
    %c0_28 = arith.constant 0 : index
    %c0_29 = arith.constant 0 : index
    %27 = vector.load %arg3[%c0_26, %c0_27, %c0_28, %c0_29] : memref<1x4x2x128xf32, #tpu.memory_space<vmem>>, vector<1x1x2x128xf32>
    %28 = vector.shape_cast %27 : vector<1x1x2x128xf32> to vector<2x128xf32>
    %29 = vector.broadcast %26 : f32 to vector<2x128xf32>
    %30 = arith.mulf %29, %28 : vector<2x128xf32>
    %c1_30 = arith.constant 1 : index
    %c1_31 = arith.constant 1 : index
    %31 = memref.load %arg2[%c1_30, %c1_31] : memref<3x4xf32, #tpu.memory_space<smem>>
    %c0_32 = arith.constant 0 : index
    %c1_33 = arith.constant 1 : index
    %c0_34 = arith.constant 0 : index
    %c0_35 = arith.constant 0 : index
    %32 = vector.load %arg3[%c0_32, %c1_33, %c0_34, %c0_35] : memref<1x4x2x128xf32, #tpu.memory_space<vmem>>, vector<1x1x2x128xf32>
    %33 = vector.shape_cast %32 : vector<1x1x2x128xf32> to vector<2x128xf32>
    %34 = vector.broadcast %31 : f32 to vector<2x128xf32>
    %35 = arith.mulf %34, %33 : vector<2x128xf32>
    %36 = arith.addf %30, %35 : vector<2x128xf32>
    %c1_36 = arith.constant 1 : index
    %c2_37 = arith.constant 2 : index
    %37 = memref.load %arg2[%c1_36, %c2_37] : memref<3x4xf32, #tpu.memory_space<smem>>
    %c0_38 = arith.constant 0 : index
    %c2_39 = arith.constant 2 : index
    %c0_40 = arith.constant 0 : index
    %c0_41 = arith.constant 0 : index
    %38 = vector.load %arg3[%c0_38, %c2_39, %c0_40, %c0_41] : memref<1x4x2x128xf32, #tpu.memory_space<vmem>>, vector<1x1x2x128xf32>
    %39 = vector.shape_cast %38 : vector<1x1x2x128xf32> to vector<2x128xf32>
    %40 = vector.broadcast %37 : f32 to vector<2x128xf32>
    %41 = arith.mulf %40, %39 : vector<2x128xf32>
    %42 = arith.addf %36, %41 : vector<2x128xf32>
    %c1_42 = arith.constant 1 : index
    %c3_43 = arith.constant 3 : index
    %43 = memref.load %arg2[%c1_42, %c3_43] : memref<3x4xf32, #tpu.memory_space<smem>>
    %c0_44 = arith.constant 0 : index
    %c3_45 = arith.constant 3 : index
    %c0_46 = arith.constant 0 : index
    %c0_47 = arith.constant 0 : index
    %44 = vector.load %arg3[%c0_44, %c3_45, %c0_46, %c0_47] : memref<1x4x2x128xf32, #tpu.memory_space<vmem>>, vector<1x1x2x128xf32>
    %45 = vector.shape_cast %44 : vector<1x1x2x128xf32> to vector<2x128xf32>
    %46 = vector.broadcast %43 : f32 to vector<2x128xf32>
    %47 = arith.mulf %46, %45 : vector<2x128xf32>
    %48 = arith.addf %42, %47 : vector<2x128xf32>
    %c0_48 = arith.constant 0 : index
    %c1_49 = arith.constant 1 : index
    %c0_50 = arith.constant 0 : index
    %c0_51 = arith.constant 0 : index
    %49 = vector.load %arg4[%c0_48, %c1_49, %c0_50, %c0_51] : memref<1x3x2x128xf32, #tpu.memory_space<vmem>>, vector<1x1x2x128xf32>
    %50 = vector.shape_cast %49 : vector<1x1x2x128xf32> to vector<2x128xf32>
    %51 = vector.shape_cast %48 : vector<2x128xf32> to vector<1x1x2x128xf32>
    tpu.vector_store %arg4[%c0_48, %c1_49, %c0_50, %c0_51], %51 {strides = array<i32>} : memref<1x3x2x128xf32, #tpu.memory_space<vmem>>, vector<1x1x2x128xf32>,
    %c2_52 = arith.constant 2 : index
    %c0_53 = arith.constant 0 : index
    %52 = memref.load %arg2[%c2_52, %c0_53] : memref<3x4xf32, #tpu.memory_space<smem>>
    %c0_54 = arith.constant 0 : index
    %c0_55 = arith.constant 0 : index
    %c0_56 = arith.constant 0 : index
    %c0_57 = arith.constant 0 : index
    %53 = vector.load %arg3[%c0_54, %c0_55, %c0_56, %c0_57] : memref<1x4x2x128xf32, #tpu.memory_space<vmem>>, vector<1x1x2x128xf32>
    %54 = vector.shape_cast %53 : vector<1x1x2x128xf32> to vector<2x128xf32>
    %55 = vector.broadcast %52 : f32 to vector<2x128xf32>
    %56 = arith.mulf %55, %54 : vector<2x128xf32>
    %c2_58 = arith.constant 2 : index
    %c1_59 = arith.constant 1 : index
    %57 = memref.load %arg2[%c2_58, %c1_59] : memref<3x4xf32, #tpu.memory_space<smem>>
    %c0_60 = arith.constant 0 : index
    %c1_61 = arith.constant 1 : index
    %c0_62 = arith.constant 0 : index
    %c0_63 = arith.constant 0 : index
    %58 = vector.load %arg3[%c0_60, %c1_61, %c0_62, %c0_63] : memref<1x4x2x128xf32, #tpu.memory_space<vmem>>, vector<1x1x2x128xf32>
    %59 = vector.shape_cast %58 : vector<1x1x2x128xf32> to vector<2x128xf32>
    %60 = vector.broadcast %57 : f32 to vector<2x128xf32>
    %61 = arith.mulf %60, %59 : vector<2x128xf32>
    %62 = arith.addf %56, %61 : vector<2x128xf32>
    %c2_64 = arith.constant 2 : index
    %c2_65 = arith.constant 2 : index
    %63 = memref.load %arg2[%c2_64, %c2_65] : memref<3x4xf32, #tpu.memory_space<smem>>
    %c0_66 = arith.constant 0 : index
    %c2_67 = arith.constant 2 : index
    %c0_68 = arith.constant 0 : index
    %c0_69 = arith.constant 0 : index
    %64 = vector.load %arg3[%c0_66, %c2_67, %c0_68, %c0_69] : memref<1x4x2x128xf32, #tpu.memory_space<vmem>>, vector<1x1x2x128xf32>
    %65 = vector.shape_cast %64 : vector<1x1x2x128xf32> to vector<2x128xf32>
    %66 = vector.broadcast %63 : f32 to vector<2x128xf32>
    %67 = arith.mulf %66, %65 : vector<2x128xf32>
    %68 = arith.addf %62, %67 : vector<2x128xf32>
    %c2_70 = arith.constant 2 : index
    %c3_71 = arith.constant 3 : index
    %69 = memref.load %arg2[%c2_70, %c3_71] : memref<3x4xf32, #tpu.memory_space<smem>>
    %c0_72 = arith.constant 0 : index
    %c3_73 = arith.constant 3 : index
    %c0_74 = arith.constant 0 : index
    %c0_75 = arith.constant 0 : index
    %70 = vector.load %arg3[%c0_72, %c3_73, %c0_74, %c0_75] : memref<1x4x2x128xf32, #tpu.memory_space<vmem>>, vector<1x1x2x128xf32>
    %71 = vector.shape_cast %70 : vector<1x1x2x128xf32> to vector<2x128xf32>
    %72 = vector.broadcast %69 : f32 to vector<2x128xf32>
    %73 = arith.mulf %72, %71 : vector<2x128xf32>
    %74 = arith.addf %68, %73 : vector<2x128xf32>
    %c0_76 = arith.constant 0 : index
    %c2_77 = arith.constant 2 : index
    %c0_78 = arith.constant 0 : index
    %c0_79 = arith.constant 0 : index
    %75 = vector.load %arg4[%c0_76, %c2_77, %c0_78, %c0_79] : memref<1x3x2x128xf32, #tpu.memory_space<vmem>>, vector<1x1x2x128xf32>
    %76 = vector.shape_cast %75 : vector<1x1x2x128xf32> to vector<2x128xf32>
    %77 = vector.shape_cast %74 : vector<2x128xf32> to vector<1x1x2x128xf32>
    tpu.vector_store %arg4[%c0_76, %c2_77, %c0_78, %c0_79], %77 {strides = array<i32>} : memref<1x3x2x128xf32, #tpu.memory_space<vmem>>, vector<1x1x2x128xf32>,
    return
  }
  func.func @transform_0(%arg0: i32, %arg1: i32) -> (i32, i32) {
    %c0_i32 = arith.constant 0 : i32
    %c0_i32_0 = arith.constant 0 : i32
    %c0_i32_1 = arith.constant 0 : i32
    return %c0_i32, %c0_i32_0 : i32, i32
  }
  func.func @transform_1(%arg0: i32, %arg1: i32) -> (i32, i32, i32, i32) {
    %c0_i32 = arith.constant 0 : i32
    %c0_i32_0 = arith.constant 0 : i32
    %c0_i32_1 = arith.constant 0 : i32
    return %arg0, %c0_i32, %arg1, %c0_i32_0 : i32, i32, i32, i32
  }
  func.func @transform_2(%arg0: i32, %arg1: i32) -> (i32, i32, i32, i32) {
    %c0_i32 = arith.constant 0 : i32
    %c0_i32_0 = arith.constant 0 : i32
    %c0_i32_1 = arith.constant 0 : i32
    return %arg0, %c0_i32, %arg1, %c0_i32_0 : i32, i32, i32, i32
  }
}

</mosaic_0001>

<llo_original>
// kernel: output_conv.1
$region0: #{output_conv.1}
  #allocation0 [shape = 'u32[]', space=smem, size = 0x4, offset = 0x4, fixed_abs, tag = 'smem constant byte address 0x4 - core index']
  #allocation1 [shape = 'u32[144,128]{1,0:T(1,128)}', space=vmem, size = 0x12000, scoped, tag = 'internal scratch']
  %s0 = inlined_call_operand.vmem [shape: f32[3,4], index: 0, kind: input, shape index: {}]
  %s1 = inlined_call_operand.vmem [shape: f32[2,4,2,128], index: 1, kind: input, shape index: {}]
  %s2 = inlined_call_operand.vmem [shape: f32[2,3,2,128], index: 2, kind: output, shape index: {}]
  %s3 = sld [smem:[#allocation0]]
  $region45: #{output_conv.1} parent=0
    _
  %s5 = ssub.s32 1, %s3
  %s6 = scalar_select 0, %s5, %s3
  $region1: #{output_conv.1} parent=0
    #allocation2 [shape = 'u8[2048]{0}', space=smem, size = 0x800, scoped, tag = 'input window, operand 0, single buffered']
    #allocation3 [shape = 's32[2]{0}', space=sflag, size = 0x8, scoped, tag = 'scoped memory for output_conv.1']
    %7 = vsyncpa [#allocation3], 0
    loop: start=0, step=1, limit=4
    $region2: #{output_conv.1} parent=1 // loop_pre_header
      _
    $region3: #{output_conv.1} parent=1 // loop_header
      %s9 = sphi 0, %s13
      %p10 = scmp.ge.s32.totalorder %s9, 4
      %s16 = sphi 0, %s28
      %s17 = sphi 0, %s24
      %s18 = sphi 0, %s16
      %s19 = sphi 0, %s17
      %s20 = sphi 0, %s18
      %s21 = sphi 0, %s19
      %s29 = sphi 0, %s29
      %s31 = sphi 0, %s29
      %s32 = sphi 0, %s31
      %s46 = sphi 0, %s32
      %s54 = sphi 0, %s56
      %s57 = sphi 0, %s54
      %s58 = sphi 0, %s57
      %s74 = sphi 0, %s58
      %s82 = sphi 0, %s84
      %s85 = sphi 0, %s82
      %s86 = sphi 0, %s85
      %s102 = sphi 0, %s86
    $region4: #{output_conv.1} parent=1 // loop_header_branch
      %12 = sbr.rel (%p10) target = $region8
    $region5: #{output_conv.1} parent=1 // loop_body
      %s14 = ssub.s32 %s9, 1
      %s15 = ssub.s32 %s9, 2
      %s22 = sadd.s32 1, %s17
      %p23 = scmp.ge.s32.totalorder %s22, 1
      %s24 = scalar_select %p23, 0, %s22
      %s25 = sadd.s32 1, %s16
      %s26 = scalar_select %p23, %s25, %s16
      %p27 = scmp.ge.s32.totalorder %s26, 2
      %s28 = scalar_select %p27, 0, %s26
      %s30 = sadd.s32 %s29, 1
      %p33 = scmp.eq.s32.totalorder %s9, 1
      %p34 = scmp.ne.s32.totalorder %s29, %s31
      %p35 = scmp.eq.s32.totalorder %s9, 0
      %p36 = por %p34, %p35
      %p37 = scmp.ne.s32.totalorder %s29, %s31
      %p38 = scmp.eq.s32.totalorder %s14, 1
      %p39 = por %p37, %p38
      %p40 = scmp.ne.s32.totalorder %s31, %s32
      %p41 = scmp.eq.s32.totalorder %s14, 0
      %p42 = por %p40, %p41
      %p43 = scmp.ne.s32.totalorder %s31, %s32
      %p44 = scmp.eq.s32.totalorder %s15, 1
      %p45 = por %p43, %p44
      %p47 = scmp.ne.s32.totalorder %s32, %s46
      %p48 = scmp.eq.s32.totalorder %s15, 0
      %p49 = por %p47, %p48
      %s50 = ssub.s32 %s16, %s28
      %s51 = ssub.s32 %s17, %s24
      %s52 = sor.u32 %s50, %s51
      %p53 = scmp.eq.s32.totalorder %s52, 0
      %s55 = sadd.s32 %s54, 1
      %s56 = scalar_select %p53, %s54, %s55
      %p59 = pneg %p53
      %p60 = scmp.eq.s32.totalorder %s9, 1
      %p61 = por %p59, %p60
      %p62 = scmp.ne.s32.totalorder %s54, %s57
      %p63 = scmp.eq.s32.totalorder %s9, 0
      %p64 = por %p62, %p63
      %p65 = scmp.ne.s32.totalorder %s54, %s57
      %p66 = scmp.eq.s32.totalorder %s14, 1
      %p67 = por %p65, %p66
      %p68 = scmp.ne.s32.totalorder %s57, %s58
      %p69 = scmp.eq.s32.totalorder %s14, 0
      %p70 = por %p68, %p69
      %p71 = scmp.ne.s32.totalorder %s57, %s58
      %p72 = scmp.eq.s32.totalorder %s15, 1
      %p73 = por %p71, %p72
      %p75 = scmp.ne.s32.totalorder %s58, %s74
      %p76 = scmp.eq.s32.totalorder %s15, 0
      %p77 = por %p75, %p76
      %s78 = ssub.s32 %s16, %s28
      %s79 = ssub.s32 %s17, %s24
      %s80 = sor.u32 %s78, %s79
      %p81 = scmp.eq.s32.totalorder %s80, 0
      %s83 = sadd.s32 %s82, 1
      %s84 = scalar_select %p81, %s82, %s83
      %p87 = pneg %p81
      %p88 = scmp.eq.s32.totalorder %s9, 1
      %p89 = por %p87, %p88
      %p90 = scmp.ne.s32.totalorder %s82, %s85
      %p91 = scmp.eq.s32.totalorder %s9, 0
      %p92 = por %p90, %p91
      %p93 = scmp.ne.s32.totalorder %s82, %s85
      %p94 = scmp.eq.s32.totalorder %s14, 1
      %p95 = por %p93, %p94
      %p96 = scmp.ne.s32.totalorder %s85, %s86
      %p97 = scmp.eq.s32.totalorder %s14, 0
      %p98 = por %p96, %p97
      %p99 = scmp.ne.s32.totalorder %s85, %s86
      %p100 = scmp.eq.s32.totalorder %s15, 1
      %p101 = por %p99, %p100
      %p103 = scmp.ne.s32.totalorder %s86, %s102
      %p104 = scmp.eq.s32.totalorder %s15, 0
      %p105 = por %p103, %p104
      %p106 = scmp.le.s32.totalorder 1, %s9
      %p107 = scmp.lt.s32.totalorder %s9, 3
      %p108 = pnand %p106, %p107
      %p109 = pneg %p108
      // Predicated region
      $region9: #{output_conv.1} parent=5 // pred_check
        _
      $region10: #{output_conv.1} parent=5 // pred_check_branch
        %111 = sbr.rel (%p108) target = $region12
      $region11: #{output_conv.1} parent=5 // pred_region
        %s112 = ssub.s32 %s9, 1
        // Predicated region
        $region13: #{output_conv.1} parent=11 // pred_check
          %p113 = pneg %p42
        $region14: #{output_conv.1} parent=11 // pred_check_branch
          %115 = sbr.rel (%p113) target = $region16
        $region15: #{output_conv.1} parent=11 // pred_region
          %s117 = ssub.s32 64, 64
          %118 = vsyncadd [#allocation3], %s117
          %s120 = sshll.u32 %s0, 4
          %s121 = int_to_ptr.vmem [resolvable:$true] %s120
          %123 = dma.vmem_to_smem %s121, 64, [#allocation2], [#allocation3]
        $region16: #{output_conv.1} parent=11 // pred_fallthru
          _
      $region12: #{output_conv.1} parent=5 // pred_fallthru
        _
      %p124 = scmp.lt.s32.totalorder %s9, 2
      // Predicated region
      $region17: #{output_conv.1} parent=5 // pred_check
        %p125 = pneg %p124
      $region18: #{output_conv.1} parent=5 // pred_check_branch
        %127 = sbr.rel (%p125) target = $region20
      $region19: #{output_conv.1} parent=5 // pred_region
        // Predicated region
        $region21: #{output_conv.1} parent=19 // pred_check
          %p128 = pneg %p64
        $region22: #{output_conv.1} parent=19 // pred_check_branch
          %130 = sbr.rel (%p128) target = $region24
        $region23: #{output_conv.1} parent=19 // pred_region
          %p131 = scmp.lt.s32.totalorder %s16, 1
          %s132 = scalar_select %p131, %s16, 1
          %p133 = scmp.lt.s32.totalorder %s17, 0
          %s134 = scalar_select %p133, %s17, 0
          %s135 = smul.addr %s132, 4
          %s136 = sadd.s32 %s134, %s135
          %s137 = smul.addr %s136, 2
          %s138 = scalar_lea.vmem %s1, %s137
        $region24: #{output_conv.1} parent=19 // pred_fallthru
          _
      $region20: #{output_conv.1} parent=5 // pred_fallthru
        _
      %p139 = scmp.le.s32.totalorder 1, %s9
      %p140 = scmp.lt.s32.totalorder %s9, 3
      %p141 = pnand %p139, %p140
      %p142 = pneg %p141
      // Predicated region
      $region25: #{output_conv.1} parent=5 // pred_check
        _
      $region26: #{output_conv.1} parent=5 // pred_check_branch
        %144 = sbr.rel (%p141) target = $region28
      $region27: #{output_conv.1} parent=5 // pred_region
        %s145 = ssub.s32 %s9, 1
        // Predicated region
        $region29: #{output_conv.1} parent=27 // pred_check
          %p146 = pneg %p42
        $region30: #{output_conv.1} parent=27 // pred_check_branch
          %148 = sbr.rel (%p146) target = $region32
        $region31: #{output_conv.1} parent=27 // pred_region
          %149 = dma.done [#allocation3], 64
        $region32: #{output_conv.1} parent=27 // pred_fallthru
          _
        %150 = sfence
        %p151 = pneg %p42
        %p152 = pneg %p39
        %p153 = scmp.lt.s32.totalorder %s18, 1
        %s154 = scalar_select %p153, %s18, 1
        %p155 = scmp.lt.s32.totalorder %s19, 0
        %s156 = scalar_select %p155, %s19, 0
        %s157 = smul.addr %s154, 4
        %s158 = sadd.s32 %s156, %s157
        %s159 = smul.addr %s158, 2
        %s160 = scalar_lea.vmem %s1, %s159
        %p161 = pneg %p70
        %p162 = pneg %p67
        %p163 = pneg %p98
        %p164 = pneg %p95
        %p165 = scmp.lt.s32.totalorder %s18, 1
        %s166 = scalar_select %p165, %s18, 1
        %p167 = scmp.lt.s32.totalorder %s19, 0
        %s168 = scalar_select %p167, %s19, 0
        %s169 = smul.addr %s166, 3
        %s170 = sadd.s32 %s168, %s169
        %s171 = smul.addr %s170, 2
        %s172 = scalar_lea.vmem %s2, %s171
        %p173 = scmp.lt.s32.totalorder %s18, 1
        %s174 = scalar_select %p173, %s18, 1
        %p175 = scmp.lt.s32.totalorder %s19, 0
        %s176 = scalar_select %p175, %s19, 0
        %s177 = smul.addr %s174, 4
        %s178 = sadd.s32 %s176, %s177
        %s179 = smul.addr %s178, 2
        %s180 = scalar_lea.vmem %s1, %s179
        %p181 = scmp.lt.s32.totalorder %s18, 1
        %s182 = scalar_select %p181, %s18, 1
        %p183 = scmp.lt.s32.totalorder %s19, 0
        %s184 = scalar_select %p183, %s19, 0
        %s185 = smul.addr %s182, 3
        %s186 = sadd.s32 %s184, %s185
        %s187 = smul.addr %s186, 2
        %s188 = scalar_lea.vmem %s2, %s187
        %s189 = sld [smem:[#allocation2]]
        %v190 = vld [vmem:[%s180] sm:$0x3]
        %v191 = vstv %s189
        %v192 = vmul.f32 %v191, %v190
        %s193 = sld [smem:[#allocation2 + $0x1]]
        %s194 = scalar_lea.vmem %s180, 2
        %v195 = vld [vmem:[%s194] sm:$0x3]
        %v196 = vstv %s193
        %v197 = vmul.f32 %v196, %v195
        %v198 = vadd.f32 %v192, %v197
        %s199 = sld [smem:[#allocation2 + $0x2]]
        %s200 = scalar_lea.vmem %s180, 4
        %v201 = vld [vmem:[%s200] sm:$0x3]
        %v202 = vstv %s199
        %v203 = vmul.f32 %v202, %v201
        %v204 = vadd.f32 %v198, %v203
        %s205 = sld [smem:[#allocation2 + $0x3]]
        %s206 = scalar_lea.vmem %s180, 6
        %v207 = vld [vmem:[%s206] sm:$0x3]
        %v208 = vstv %s205
        %v209 = vmul.f32 %v208, %v207
        %v210 = vadd.f32 %v204, %v209
        %211 = vst [vmem:[%s188] sm:$0x3] %v210
        %s212 = sld [smem:[#allocation2 + $0x80]]
        %v213 = vld [vmem:[%s180] sm:$0x3]
        %v214 = vstv %s212
        %v215 = vmul.f32 %v214, %v213
        %s216 = sld [smem:[#allocation2 + $0x81]]
        %v217 = vld [vmem:[%s194] sm:$0x3]
        %v218 = vstv %s216
        %v219 = vmul.f32 %v218, %v217
        %v220 = vadd.f32 %v215, %v219
        %s221 = sld [smem:[#allocation2 + $0x82]]
        %v222 = vld [vmem:[%s200] sm:$0x3]
        %v223 = vstv %s221
        %v224 = vmul.f32 %v223, %v222
        %v225 = vadd.f32 %v220, %v224
        %s226 = sld [smem:[#allocation2 + $0x83]]
        %v227 = vld [vmem:[%s206] sm:$0x3]
        %v228 = vstv %s226
        %v229 = vmul.f32 %v228, %v227
        %v230 = vadd.f32 %v225, %v229
        %s231 = scalar_lea.vmem %s188, 2
        %232 = vst [vmem:[%s231] sm:$0x3] %v230
        %s233 = sld [smem:[#allocation2 + $0x100]]
        %v234 = vld [vmem:[%s180] sm:$0x3]
        %v235 = vstv %s233
        %v236 = vmul.f32 %v235, %v234
        %s237 = sld [smem:[#allocation2 + $0x101]]
        %v238 = vld [vmem:[%s194] sm:$0x3]
        %v239 = vstv %s237
        %v240 = vmul.f32 %v239, %v238
        %v241 = vadd.f32 %v236, %v240
        %s242 = sld [smem:[#allocation2 + $0x102]]
        %v243 = vld [vmem:[%s200] sm:$0x3]
        %v244 = vstv %s242
        %v245 = vmul.f32 %v244, %v243
        %v246 = vadd.f32 %v241, %v245
        %s247 = sld [smem:[#allocation2 + $0x103]]
        %v248 = vld [vmem:[%s206] sm:$0x3]
        %v249 = vstv %s247
        %v250 = vmul.f32 %v249, %v248
        %v251 = vadd.f32 %v246, %v250
        %s252 = scalar_lea.vmem %s188, 4
        %253 = vst [vmem:[%s252] sm:$0x3] %v251
        %p254 = scmp.lt.s32.totalorder %s18, 1
        %s255 = scalar_select %p254, %s18, 1
        %p256 = scmp.lt.s32.totalorder %s19, 0
        %s257 = scalar_select %p256, %s19, 0
        %s258 = smul.addr %s255, 3
        %s259 = sadd.s32 %s257, %s258
        %s260 = smul.addr %s259, 2
        %s261 = scalar_lea.vmem %s2, %s260
        // Predicated region
        $region33: #{output_conv.1} parent=27 // pred_check
          %p262 = pneg %p95
        $region34: #{output_conv.1} parent=27 // pred_check_branch
          %264 = sbr.rel (%p262) target = $region36
        $region35: #{output_conv.1} parent=27 // pred_region
          _
        $region36: #{output_conv.1} parent=27 // pred_fallthru
          _
      $region28: #{output_conv.1} parent=5 // pred_fallthru
        _
      %p265 = scmp.le.s32.totalorder 2, %s9
      // Predicated region
      $region37: #{output_conv.1} parent=5 // pred_check
        %p266 = pneg %p265
      $region38: #{output_conv.1} parent=5 // pred_check_branch
        %268 = sbr.rel (%p266) target = $region40
      $region39: #{output_conv.1} parent=5 // pred_region
        %s269 = ssub.s32 %s9, 2
        // Predicated region
        $region41: #{output_conv.1} parent=39 // pred_check
          %p270 = pneg %p101
        $region42: #{output_conv.1} parent=39 // pred_check_branch
          %272 = sbr.rel (%p270) target = $region44
        $region43: #{output_conv.1} parent=39 // pred_region
          %p273 = scmp.lt.s32.totalorder %s20, 1
          %s274 = scalar_select %p273, %s20, 1
          %p275 = scmp.lt.s32.totalorder %s21, 0
          %s276 = scalar_select %p275, %s21, 0
          %s277 = smul.addr %s274, 3
          %s278 = sadd.s32 %s276, %s277
          %s279 = smul.addr %s278, 2
          %s280 = scalar_lea.vmem %s2, %s279
        $region44: #{output_conv.1} parent=39 // pred_fallthru
          _
      $region40: #{output_conv.1} parent=5 // pred_fallthru
        _
    $region6: #{output_conv.1} parent=1 // loop_footer
      %s13 = sadd.s32 1, %s9
    $region7: #{output_conv.1} parent=1 // loop_footer_branch
      %8 = sbr.rel target = $region3
    $region8: #{output_conv.1} parent=1 // loop_exit
      _
    %281 = vsyncpa [#allocation3], 1
    %s282 = scalar_lea.sflag [#allocation3], 1
    %283 = vsyncpa %s282, 1

</llo_original>
